<compile_context>
chip_gen: v5e
topology: v5e:2x2
jax: 0.10.0
libtpu: 0.0.40
codegen_flags: <defaults>
</compile_context>

<pallas_src>
import jax
import jax.numpy as jnp
from jax.experimental import pallas as pl
from jax.experimental.pallas import tpu as pltpu


def _round_up(x, m):
    return (x + m - 1) // m * m


# ---------------------------------------------------------------------------
# Kernel
# ---------------------------------------------------------------------------
def critic_kernel(x_ref, w1_ref, b1_ref, w2_ref, b2_ref, w3_ref, b3_ref, out_ref):
    # Layer 1: fused (state|action) Linear -> ReLU.  bf16 operands, f32 accumulate.
    h1 = (jnp.dot(x_ref[...], w1_ref[...], preferred_element_type=jnp.float32)
          + b1_ref[...])
    h1 = jnp.maximum(h1, 0.0).astype(jnp.bfloat16)

    # Layer 2: Linear -> ReLU.
    h2 = jnp.dot(h1, w2_ref[...], preferred_element_type=jnp.float32) + b2_ref[...]
    h2 = jnp.maximum(h2, 0.0)

    # Layer 3 (value head, out_features=1): elementwise * single f32 weight row
    # + lane reduction (XLU) instead of a mostly-dead MXU matmul.  Written
    # lane-dense (batch on lanes), broadcast over the 8 sublanes of the block.
    v = jnp.sum(h2 * w3_ref[...], axis=-1) + b3_ref[0, 0]          # (TB,) f32
    tb = out_ref.shape[-1]
    out_ref[...] = jnp.broadcast_to(v.reshape(1, 1, tb), (1, 8, tb))


# ---------------------------------------------------------------------------
# Host wrapper
# ---------------------------------------------------------------------------
@jax.jit
def critic_forward(x, a, dev_params):
    """x: (B, state_dim) f32, a: (B, action_dim) f32 -> (B, 1) f32."""
    w1, b1, w2, b2, w3, b3 = dev_params
    B, S = x.shape
    _, A = a.shape
    Din = S + A
    Dp, H1p = w1.shape
    H2p = w2.shape[1]

    # Batch tiling: cap TB at 512 (working set stays far below VMEM limits on
    # all generations); for non-trivial batches pick TB so the "parallel" grid
    # has >= 2 steps, keeping both v7x TensorCores busy.
    TB_MAX = 512
    Bp = _round_up(max(B, 8), 8)
    if Bp > 16:
        TB = min(TB_MAX, _round_up(pl.cdiv(Bp, 2), 8))
    else:
        TB = Bp
    Bp = _round_up(Bp, TB)
    grid_b = Bp // TB

    # Single fused, zero-padded bf16 operand: [state | action | 0 ...] per row.
    xa = jnp.concatenate([x, a], axis=1).astype(jnp.bfloat16)      # (B, Din)
    x_p = jnp.pad(xa, ((0, Bp - B), (0, Dp - Din)))                # (Bp, Dp)

    flops = 2 * Bp * (Dp * H1p + H1p * H2p + H2p)
    bytes_accessed = (
        (x_p.size + w1.size + w2.size) * 2                          # bf16
        + (b1.size + b2.size + w3.size + b3.size) * 4               # f32
        + grid_b * 8 * TB * 4)                                      # output

    out = pl.pallas_call(
        critic_kernel,
        out_shape=jax.ShapeDtypeStruct((grid_b, 8, TB), jnp.float32),
        grid=(grid_b,),
        in_specs=[
            pl.BlockSpec((TB, Dp), lambda i: (i, 0)),      # fused input tile (streams)
            pl.BlockSpec((Dp, H1p), lambda i: (0, 0)),     # W1 (resident)
            pl.BlockSpec((1, H1p), lambda i: (0, 0)),      # b1
            pl.BlockSpec((H1p, H2p), lambda i: (0, 0)),    # W2 (resident)
            pl.BlockSpec((1, H2p), lambda i: (0, 0)),      # b2
            pl.BlockSpec((1, H2p), lambda i: (0, 0)),      # w3 row (f32)
            pl.BlockSpec((1, 1), lambda i: (0, 0)),        # b3
        ],
        out_specs=pl.BlockSpec((1, 8, TB), lambda i: (i, 0, 0)),
        compiler_params=pltpu.CompilerParams(
            dimension_semantics=("parallel",),
            vmem_limit_bytes=32 << 20,
        ),
        cost_estimate=pl.CostEstimate(
            flops=flops, transcendentals=0, bytes_accessed=bytes_accessed),
    )(x_p, w1, b1, w2, b2, w3, b3)

    # Sublane 0 of each tile holds the values; batch sits on the lane axis.
    return out[:, 0, :].reshape(-1)[:B].reshape(B, 1)


# ---------------------------------------------------------------------------
# Parameter handling
# ---------------------------------------------------------------------------
def init_critic_params(key, state_dim, action_dim):
    """torch.nn.Linear-default init (U[-1/sqrt(fan_in), 1/sqrt(fan_in)]).

    Returns raw f32 params with weights stored as (in_features, out_features)."""
    dims = [(state_dim + action_dim, 400), (400, 300), (300, 1)]
    params = []
    for fan_in, fan_out in dims:
        key, kw, kb = jax.random.split(key, 3)
        bound = 1.0 / (fan_in ** 0.5)
        w = jax.random.uniform(kw, (fan_in, fan_out), jnp.float32, -bound, bound)
        b = jax.random.uniform(kb, (fan_out,), jnp.float32, -bound, bound)
        params.extend([w, b])
    return tuple(params)


def prepare_critic_params(params):
    """One-time: pad input/hidden dims to 128 multiples, cast matmul weights to
    bf16 (biases and the 1-wide head weight stay f32).  Done outside the jitted
    forward.  Zero padding is mathematically exact through the ReLUs/reduction."""
    w1, b1, w2, b2, w3, b3 = params
    Din, H1 = w1.shape
    H2 = w2.shape[1]
    Dp = _round_up(Din, 128)
    H1p = _round_up(H1, 128)
    H2p = _round_up(H2, 128)
    bf16, f32 = jnp.bfloat16, jnp.float32

    w1_p = jnp.zeros((Dp, H1p), bf16).at[:Din, :H1].set(w1.astype(bf16))
    b1_p = jnp.zeros((1, H1p), f32).at[0, :H1].set(b1.astype(f32))
    w2_p = jnp.zeros((H1p, H2p), bf16).at[:H1, :H2].set(w2.astype(bf16))
    b2_p = jnp.zeros((1, H2p), f32).at[0, :H2].set(b2.astype(f32))
    w3_p = jnp.zeros((1, H2p), f32).at[0, :H2].set(w3[:, 0].astype(f32))
    b3_p = b3.reshape(1, 1).astype(f32)
    return (w1_p, b1_p, w2_p, b2_p, w3_p, b3_p)


def critic_reference(x, a, params):
    """Pure f32 reference matching the PyTorch module."""
    w1, b1, w2, b2, w3, b3 = params
    h = jnp.concatenate([x, a], axis=1)
    h = jnp.maximum(h @ w1 + b1, 0.0)
    h = jnp.maximum(h @ w2 + b2, 0.0)
    return h @ w3 + b3


# ---------------------------------------------------------------------------
# Test
# ---------------------------------------------------------------------------
if __name__ == "__main__":
    state_dim, action_dim = 16, 4

    key = jax.random.PRNGKey(0)
    kp, kx, ka, kx2, ka2 = jax.random.split(key, 5)
    params = init_critic_params(kp, state_dim, action_dim)
    dev_params = prepare_critic_params(params)

    # Small case (single batch tile).
    batch = 2
    x = jax.random.normal(kx, (batch, state_dim), jnp.float32)
    a = jax.random.normal(ka, (batch, action_dim), jnp.float32)
    out = jax.block_until_ready(critic_forward(x, a, dev_params))
    ref = critic_reference(x, a, params)
    assert out.shape == (batch, 1), out.shape
    assert jnp.allclose(out, ref, atol=2e-2, rtol=2e-2), (out, ref)

    # Larger case exercising the multi-tile / dual-TensorCore grid path.
    batch2 = 300
    x2 = jax.random.normal(kx2, (batch2, state_dim), jnp.float32)
    a2 = jax.random.normal(ka2, (batch2, action_dim), jnp.float32)
    out2 = jax.block_until_ready(critic_forward(x2, a2, dev_params))
    ref2 = critic_reference(x2, a2, params)
    assert out2.shape == (batch2, 1), out2.shape
    assert jnp.allclose(out2, ref2, atol=2e-2, rtol=2e-2)

    print("KERNEL_OK")
</pallas_src>

<mosaic_0001>
module attributes {stable_mosaic.version = 11 : i64} {
  func.func @critic_kernel(%arg0: i32, %arg1: memref<8x128xbf16, #tpu.memory_space<vmem>>, %arg2: memref<128x512xbf16, #tpu.memory_space<vmem>>, %arg3: memref<1x512xf32, #tpu.memory_space<vmem>>, %arg4: memref<512x384xbf16, #tpu.memory_space<vmem>>, %arg5: memref<1x384xf32, #tpu.memory_space<vmem>>, %arg6: memref<1x384xf32, #tpu.memory_space<vmem>>, %arg7: memref<1x1xf32, #tpu.memory_space<vmem>>, %arg8: memref<1x8x8xf32, #tpu.memory_space<vmem>>) attributes {dimension_semantics = [#tpu.dimension_semantics<parallel>], iteration_bounds = array<i64: 1>, scalar_prefetch = 0 : i64, scratch_operands = 0 : i64, tpu.core_type = #tpu.core_type<tc>, window_params = [{transform_indices = @transform_0, window_bounds = array<i64: 8, 128>}, {pipeline_mode = #tpu.pipeline_mode<synchronous>, transform_indices = @transform_1, window_bounds = array<i64: 128, 512>}, {pipeline_mode = #tpu.pipeline_mode<synchronous>, transform_indices = @transform_2, window_bounds = array<i64: 1, 512>}, {pipeline_mode = #tpu.pipeline_mode<synchronous>, transform_indices = @transform_3, window_bounds = array<i64: 512, 384>}, {pipeline_mode = #tpu.pipeline_mode<synchronous>, transform_indices = @transform_4, window_bounds = array<i64: 1, 384>}, {pipeline_mode = #tpu.pipeline_mode<synchronous>, transform_indices = @transform_5, window_bounds = array<i64: 1, 384>}, {pipeline_mode = #tpu.pipeline_mode<synchronous>, transform_indices = @transform_6, window_bounds = array<i64: 1, 1>}, {transform_indices = @transform_7, window_bounds = array<i64: 1, 8, 8>}]} {
    %c0 = arith.constant 0 : index
    %c0_0 = arith.constant 0 : index
    %0 = vector.load %arg1[%c0, %c0_0] : memref<8x128xbf16, #tpu.memory_space<vmem>>, vector<8x128xbf16>
    %c0_1 = arith.constant 0 : index
    %c0_2 = arith.constant 0 : index
    %1 = vector.load %arg2[%c0_1, %c0_2] : memref<128x512xbf16, #tpu.memory_space<vmem>>, vector<128x512xbf16>
    %cst = arith.constant dense<0.000000e+00> : vector<8x512xf32>
    %2 = tpu.matmul %0, %1, %cst {dimension_numbers = #tpu.dot_dimension_numbers<[1], [0], [0], [1], [0, 0, 1, 1], [], []>} : vector<8x128xbf16>, vector<128x512xbf16>, vector<8x512xf32> -> vector<8x512xf32>
    %c0_3 = arith.constant 0 : index
    %c0_4 = arith.constant 0 : index
    %3 = vector.load %arg3[%c0_3, %c0_4] : memref<1x512xf32, #tpu.memory_space<vmem>>, vector<1x512xf32>
    %4 = vector.broadcast %3 : vector<1x512xf32> to vector<8x512xf32>
    %5 = arith.addf %2, %4 : vector<8x512xf32>
    %cst_5 = arith.constant 0.000000e+00 : f32
    %6 = vector.broadcast %cst_5 : f32 to vector<8x512xf32>
    %7 = arith.maximumf %5, %6 : vector<8x512xf32>
    %8 = arith.truncf %7 : vector<8x512xf32> to vector<8x512xbf16>
    %c0_6 = arith.constant 0 : index
    %c0_7 = arith.constant 0 : index
    %9 = vector.load %arg4[%c0_6, %c0_7] : memref<512x384xbf16, #tpu.memory_space<vmem>>, vector<512x384xbf16>
    %cst_8 = arith.constant dense<0.000000e+00> : vector<8x384xf32>
    %10 = tpu.matmul %8, %9, %cst_8 {dimension_numbers = #tpu.dot_dimension_numbers<[1], [0], [0], [1], [0, 0, 1, 1], [], []>} : vector<8x512xbf16>, vector<512x384xbf16>, vector<8x384xf32> -> vector<8x384xf32>
    %c0_9 = arith.constant 0 : index
    %c0_10 = arith.constant 0 : index
    %11 = vector.load %arg5[%c0_9, %c0_10] : memref<1x384xf32, #tpu.memory_space<vmem>>, vector<1x384xf32>
    %12 = vector.broadcast %11 : vector<1x384xf32> to vector<8x384xf32>
    %13 = arith.addf %10, %12 : vector<8x384xf32>
    %cst_11 = arith.constant 0.000000e+00 : f32
    %14 = vector.broadcast %cst_11 : f32 to vector<8x384xf32>
    %15 = arith.maximumf %13, %14 : vector<8x384xf32>
    %c0_12 = arith.constant 0 : index
    %c0_13 = arith.constant 0 : index
    %16 = vector.load %arg6[%c0_12, %c0_13] : memref<1x384xf32, #tpu.memory_space<vmem>>, vector<1x384xf32>
    %17 = vector.broadcast %16 : vector<1x384xf32> to vector<8x384xf32>
    %18 = arith.mulf %15, %17 : vector<8x384xf32>
    %cst_14 = arith.constant dense<0.000000e+00> : vector<8xf32>
    %19 = vector.multi_reduction <add>, %18, %cst_14 [1] : vector<8x384xf32> to vector<8xf32>
    %c0_15 = arith.constant 0 : index
    %c0_16 = arith.constant 0 : index
    %20 = vector.load %arg7[%c0_15, %c0_16] : memref<1x1xf32, #tpu.memory_space<vmem>>, vector<1x1xf32>
    %21 = vector.extract %20[0, 0] : f32 from vector<1x1xf32>
    %22 = vector.broadcast %21 : f32 to vector<8xf32>
    %23 = arith.addf %19, %22 : vector<8xf32>
    %24 = vector.shape_cast %23 : vector<8xf32> to vector<1x1x8xf32>
    %25 = vector.shape_cast %24 : vector<1x1x8xf32> to vector<1x1x8xf32>
    %26 = vector.broadcast %25 : vector<1x1x8xf32> to vector<1x8x8xf32>
    %c0_17 = arith.constant 0 : index
    %c0_18 = arith.constant 0 : index
    %c0_19 = arith.constant 0 : index
    %27 = vector.load %arg8[%c0_17, %c0_18, %c0_19] : memref<1x8x8xf32, #tpu.memory_space<vmem>>, vector<1x8x8xf32>
    tpu.vector_store %arg8[%c0_17, %c0_18, %c0_19], %26 {strides = array<i32>} : memref<1x8x8xf32, #tpu.memory_space<vmem>>, vector<1x8x8xf32>,
    return
  }
  func.func @transform_0(%arg0: i32) -> (i32, i32) {
    %c0_i32 = arith.constant 0 : i32
    %c0_i32_0 = arith.constant 0 : i32
    return %arg0, %c0_i32 : i32, i32
  }
  func.func @transform_1(%arg0: i32) -> (i32, i32) {
    %c0_i32 = arith.constant 0 : i32
    %c0_i32_0 = arith.constant 0 : i32
    %c0_i32_1 = arith.constant 0 : i32
    return %c0_i32, %c0_i32_0 : i32, i32
  }
  func.func @transform_2(%arg0: i32) -> (i32, i32) {
    %c0_i32 = arith.constant 0 : i32
    %c0_i32_0 = arith.constant 0 : i32
    %c0_i32_1 = arith.constant 0 : i32
    return %c0_i32, %c0_i32_0 : i32, i32
  }
  func.func @transform_3(%arg0: i32) -> (i32, i32) {
    %c0_i32 = arith.constant 0 : i32
    %c0_i32_0 = arith.constant 0 : i32
    %c0_i32_1 = arith.constant 0 : i32
    return %c0_i32, %c0_i32_0 : i32, i32
  }
  func.func @transform_4(%arg0: i32) -> (i32, i32) {
    %c0_i32 = arith.constant 0 : i32
    %c0_i32_0 = arith.constant 0 : i32
    %c0_i32_1 = arith.constant 0 : i32
    return %c0_i32, %c0_i32_0 : i32, i32
  }
  func.func @transform_5(%arg0: i32) -> (i32, i32) {
    %c0_i32 = arith.constant 0 : i32
    %c0_i32_0 = arith.constant 0 : i32
    %c0_i32_1 = arith.constant 0 : i32
    return %c0_i32, %c0_i32_0 : i32, i32
  }
  func.func @transform_6(%arg0: i32) -> (i32, i32) {
    %c0_i32 = arith.constant 0 : i32
    %c0_i32_0 = arith.constant 0 : i32
    %c0_i32_1 = arith.constant 0 : i32
    return %c0_i32, %c0_i32_0 : i32, i32
  }
  func.func @transform_7(%arg0: i32) -> (i32, i32, i32) {
    %c0_i32 = arith.constant 0 : i32
    %c0_i32_0 = arith.constant 0 : i32
    %c0_i32_1 = arith.constant 0 : i32
    return %arg0, %c0_i32, %c0_i32_0 : i32, i32, i32
  }
}

</mosaic_0001>

<llo_original>
// kernel: critic_forward.1
$region0: #{critic_forward.1}
  #allocation0 [shape = 'u32[]', space=smem, size = 0x4, offset = 0x4, fixed_abs, tag = 'smem constant byte address 0x4 - core index']
  #allocation1 [shape = 'u32[72,128]{1,0:T(1,128)}', space=vmem, size = 0x9000, scoped, tag = 'internal scratch']
  #allocation2 [shape = 'f32[1,1]{1,0:T(1,128)S(1)}', space=vmem, size = 0x200, scoped, tag = 'scoped memory for critic_forward.1']
  %s0 = inlined_call_operand.vmem [shape: bf16[8,128], index: 0, kind: input, shape index: {}]
  %s1 = inlined_call_operand.hbm [shape: bf16[128,512], index: 1, kind: input, shape index: {}]
  %s2 = inlined_call_operand.vmem [shape: f32[1,512], index: 2, kind: input, shape index: {}]
  %s3 = inlined_call_operand.hbm [shape: bf16[512,384], index: 3, kind: input, shape index: {}]
  %s4 = inlined_call_operand.vmem [shape: f32[1,384], index: 4, kind: input, shape index: {}]
  %s5 = inlined_call_operand.vmem [shape: f32[1,384], index: 5, kind: input, shape index: {}]
  %s6 = inlined_call_operand.<no memory space> [shape: f32[1,1], index: 6, kind: input, shape index: {}]
  %s7 = inlined_call_operand.vmem [shape: f32[1,8,8], index: 7, kind: output, shape index: {}]
  %s8 = sld [smem:[#allocation0]]
  $region46: #{critic_forward.1} parent=0
    _
  %s10 = ssub.s32 1, %s8
  %s11 = scalar_select 0, %s10, %s8
  %v12 = vstv %s6
  %13 = vst [vmem:[#allocation2] sm:$0x1] %v12
  $region1: #{critic_forward.1} parent=0
    #allocation3 [shape = 'u8[131072]{0}', space=vmem, size = 0x20000, scoped, tag = 'input window, operand 1, single buffered']
    #allocation4 [shape = 's32[1]{0}', space=sflag, size = 0x4, scoped, tag = 'scoped memory for critic_forward.1']
    #allocation5 [shape = 'u8[393216]{0}', space=vmem, size = 0x60000, scoped, tag = 'input window, operand 3, single buffered']
    #allocation6 [shape = 's32[1]{0}', space=sflag, size = 0x4, scoped, tag = 'scoped memory for critic_forward.1']
    %14 = vsyncpa [#allocation4], 0
    %15 = vsyncpa [#allocation6], 0
    // Predicated region
    $region2: #{critic_forward.1} parent=1 // pred_check
      _
    $region3: #{critic_forward.1} parent=1 // pred_check_branch
      %17 = sbr.rel (0) target = $region5
    $region4: #{critic_forward.1} parent=1 // pred_region
      _
    $region5: #{critic_forward.1} parent=1 // pred_fallthru
      _
    // Predicated region
    $region6: #{critic_forward.1} parent=1 // pred_check
      _
    $region7: #{critic_forward.1} parent=1 // pred_check_branch
      %19 = sbr.rel (0) target = $region9
    $region8: #{critic_forward.1} parent=1 // pred_region
      %21 = vsyncadd [#allocation4], 0
      %s22 = sshll.u32 %s1, 4
      %s23 = int_to_ptr.hbm [resolvable:$true] %s22
      %s24 = sshll.u32 [#allocation3], 4
      %s25 = int_to_ptr.vmem [resolvable:$true] %s24
      %30 = dma.hbm_to_vmem [thread:$0]  %s23, 4096, %s25, [#allocation4], 256, 256, 16
    $region9: #{critic_forward.1} parent=1 // pred_fallthru
      _
    // Predicated region
    $region10: #{critic_forward.1} parent=1 // pred_check
      _
    $region11: #{critic_forward.1} parent=1 // pred_check_branch
      %32 = sbr.rel (0) target = $region13
    $region12: #{critic_forward.1} parent=1 // pred_region
      _
    $region13: #{critic_forward.1} parent=1 // pred_fallthru
      _
    // Predicated region
    $region14: #{critic_forward.1} parent=1 // pred_check
      _
    $region15: #{critic_forward.1} parent=1 // pred_check_branch
      %34 = sbr.rel (0) target = $region17
    $region16: #{critic_forward.1} parent=1 // pred_region
      %36 = vsyncadd [#allocation6], 0
      %s37 = sshll.u32 %s3, 4
      %s38 = int_to_ptr.hbm [resolvable:$true] %s37
      %s39 = sshll.u32 [#allocation5], 4
      %s40 = int_to_ptr.vmem [resolvable:$true] %s39
      %45 = dma.hbm_to_vmem [thread:$0]  %s38, 12288, %s40, [#allocation6], 192, 192, 12
    $region17: #{critic_forward.1} parent=1 // pred_fallthru
      _
    // Predicated region
    $region18: #{critic_forward.1} parent=1 // pred_check
      _
    $region19: #{critic_forward.1} parent=1 // pred_check_branch
      %47 = sbr.rel (0) target = $region21
    $region20: #{critic_forward.1} parent=1 // pred_region
      _
    $region21: #{critic_forward.1} parent=1 // pred_fallthru
      _
    // Predicated region
    $region22: #{critic_forward.1} parent=1 // pred_check
      _
    $region23: #{critic_forward.1} parent=1 // pred_check_branch
      %49 = sbr.rel (0) target = $region25
    $region24: #{critic_forward.1} parent=1 // pred_region
      _
    $region25: #{critic_forward.1} parent=1 // pred_fallthru
      _
    // Predicated region
    $region26: #{critic_forward.1} parent=1 // pred_check
      _
    $region27: #{critic_forward.1} parent=1 // pred_check_branch
      %51 = sbr.rel (0) target = $region29
    $region28: #{critic_forward.1} parent=1 // pred_region
      _
    $region29: #{critic_forward.1} parent=1 // pred_fallthru
      _
    // Predicated region
    $region30: #{critic_forward.1} parent=1 // pred_check
      _
    $region31: #{critic_forward.1} parent=1 // pred_check_branch
      %53 = sbr.rel (0) target = $region33
    $region32: #{critic_forward.1} parent=1 // pred_region
      %55 = dma.done [#allocation4], 4096
    $region33: #{critic_forward.1} parent=1 // pred_fallthru
      _
    // Predicated region
    $region34: #{critic_forward.1} parent=1 // pred_check
      _
    $region35: #{critic_forward.1} parent=1 // pred_check_branch
      %57 = sbr.rel (0) target = $region37
    $region36: #{critic_forward.1} parent=1 // pred_region
      %59 = dma.done [#allocation6], 12288
    $region37: #{critic_forward.1} parent=1 // pred_fallthru
      _
    %v60 = vld [vmem:[%s0] sm:$0xf]
    %v61 = vld [vmem:[#allocation3] sm:$0xff]
    %v62 = vld [vmem:[#allocation3 + $0x8] sm:$0xff]
    %v63 = vld [vmem:[#allocation3 + $0x10] sm:$0xff]
    %v64 = vld [vmem:[#allocation3 + $0x18] sm:$0xff]
    %v65 = vld [vmem:[#allocation3 + $0x20] sm:$0xff]
    %v66 = vld [vmem:[#allocation3 + $0x28] sm:$0xff]
    %v67 = vld [vmem:[#allocation3 + $0x30] sm:$0xff]
    %v68 = vld [vmem:[#allocation3 + $0x38] sm:$0xff]
    %v69 = vld [vmem:[#allocation3 + $0x40] sm:$0xff]
    %v70 = vld [vmem:[#allocation3 + $0x48] sm:$0xff]
    %v71 = vld [vmem:[#allocation3 + $0x50] sm:$0xff]
    %v72 = vld [vmem:[#allocation3 + $0x58] sm:$0xff]
    %v73 = vld [vmem:[#allocation3 + $0x60] sm:$0xff]
    %v74 = vld [vmem:[#allocation3 + $0x68] sm:$0xff]
    %v75 = vld [vmem:[#allocation3 + $0x70] sm:$0xff]
    %v76 = vld [vmem:[#allocation3 + $0x78] sm:$0xff]
    %v77 = vld [vmem:[#allocation3 + $0x80] sm:$0xff]
    %v78 = vld [vmem:[#allocation3 + $0x88] sm:$0xff]
    %v79 = vld [vmem:[#allocation3 + $0x90] sm:$0xff]
    %v80 = vld [vmem:[#allocation3 + $0x98] sm:$0xff]
    %v81 = vld [vmem:[#allocation3 + $0xa0] sm:$0xff]
    %v82 = vld [vmem:[#allocation3 + $0xa8] sm:$0xff]
    %v83 = vld [vmem:[#allocation3 + $0xb0] sm:$0xff]
    %v84 = vld [vmem:[#allocation3 + $0xb8] sm:$0xff]
    %v85 = vld [vmem:[#allocation3 + $0xc0] sm:$0xff]
    %v86 = vld [vmem:[#allocation3 + $0xc8] sm:$0xff]
    %v87 = vld [vmem:[#allocation3 + $0xd0] sm:$0xff]
    %v88 = vld [vmem:[#allocation3 + $0xd8] sm:$0xff]
    %v89 = vld [vmem:[#allocation3 + $0xe0] sm:$0xff]
    %v90 = vld [vmem:[#allocation3 + $0xe8] sm:$0xff]
    %v91 = vld [vmem:[#allocation3 + $0xf0] sm:$0xff]
    %v92 = vld [vmem:[#allocation3 + $0xf8] sm:$0xff]
    %v93 = vld [vmem:[%s2] sm:$0xf]
    %v95 = vperm.slane %v93, 0
    %v96 = vperm.slane %v93, 1
    %v97 = vperm.slane %v93, 2
    %v98 = vperm.slane %v93, 3
    %v135 = vunpack.c.l.b16 %v61
    %v136 = vunpack.c.h.b16 %v61
    %v137 = vunpack.c.l.b16 %v62
    %v138 = vunpack.c.h.b16 %v62
    %v139 = vunpack.c.l.b16 %v63
    %v140 = vunpack.c.h.b16 %v63
    %v141 = vunpack.c.l.b16 %v64
    %v142 = vunpack.c.h.b16 %v64
    %v143 = vunpack.c.l.b16 %v65
    %v144 = vunpack.c.h.b16 %v65
    %v145 = vunpack.c.l.b16 %v66
    %v146 = vunpack.c.h.b16 %v66
    %v147 = vunpack.c.l.b16 %v67
    %v148 = vunpack.c.h.b16 %v67
    %v149 = vunpack.c.l.b16 %v68
    %v150 = vunpack.c.h.b16 %v68
    %v151 = vunpack.c.l.b16 %v69
    %v152 = vunpack.c.h.b16 %v69
    %v153 = vunpack.c.l.b16 %v70
    %v154 = vunpack.c.h.b16 %v70
    %v155 = vunpack.c.l.b16 %v71
    %v156 = vunpack.c.h.b16 %v71
    %v157 = vunpack.c.l.b16 %v72
    %v158 = vunpack.c.h.b16 %v72
    %v159 = vunpack.c.l.b16 %v73
    %v160 = vunpack.c.h.b16 %v73
    %v161 = vunpack.c.l.b16 %v74
    %v162 = vunpack.c.h.b16 %v74
    %v163 = vunpack.c.l.b16 %v75
    %v164 = vunpack.c.h.b16 %v75
    %v165 = vunpack.c.l.b16 %v76
    %v166 = vunpack.c.h.b16 %v76
    %v167 = vunpack.c.l.b16 %v77
    %v168 = vunpack.c.h.b16 %v77
    %v169 = vunpack.c.l.b16 %v78
    %v170 = vunpack.c.h.b16 %v78
    %v171 = vunpack.c.l.b16 %v79
    %v172 = vunpack.c.h.b16 %v79
    %v173 = vunpack.c.l.b16 %v80
    %v174 = vunpack.c.h.b16 %v80
    %v175 = vunpack.c.l.b16 %v81
    %v176 = vunpack.c.h.b16 %v81
    %v177 = vunpack.c.l.b16 %v82
    %v178 = vunpack.c.h.b16 %v82
    %v179 = vunpack.c.l.b16 %v83
    %v180 = vunpack.c.h.b16 %v83
    %v181 = vunpack.c.l.b16 %v84
    %v182 = vunpack.c.h.b16 %v84
    %v183 = vunpack.c.l.b16 %v85
    %v184 = vunpack.c.h.b16 %v85
    %v185 = vunpack.c.l.b16 %v86
    %v186 = vunpack.c.h.b16 %v86
    %v187 = vunpack.c.l.b16 %v87
    %v188 = vunpack.c.h.b16 %v87
    %v189 = vunpack.c.l.b16 %v88
    %v190 = vunpack.c.h.b16 %v88
    %v191 = vunpack.c.l.b16 %v89
    %v192 = vunpack.c.h.b16 %v89
    %v193 = vunpack.c.l.b16 %v90
    %v194 = vunpack.c.h.b16 %v90
    %v195 = vunpack.c.l.b16 %v91
    %v196 = vunpack.c.h.b16 %v91
    %v197 = vunpack.c.l.b16 %v92
    %v198 = vunpack.c.h.b16 %v92
    %v199 = vpack.c.b16 %v139, %v135
    %v200 = vpack.c.b16 %v140, %v136
    %v201 = vpack.c.b16 %v141, %v137
    %v202 = vpack.c.b16 %v142, %v138
    %v203 = vpack.c.b16 %v147, %v143
    %v204 = vpack.c.b16 %v148, %v144
    %v205 = vpack.c.b16 %v149, %v145
    %v206 = vpack.c.b16 %v150, %v146
    %v207 = vpack.c.b16 %v155, %v151
    %v208 = vpack.c.b16 %v156, %v152
    %v209 = vpack.c.b16 %v157, %v153
    %v210 = vpack.c.b16 %v158, %v154
    %v211 = vpack.c.b16 %v163, %v159
    %v212 = vpack.c.b16 %v164, %v160
    %v213 = vpack.c.b16 %v165, %v161
    %v214 = vpack.c.b16 %v166, %v162
    %v215 = vpack.c.b16 %v171, %v167
    %v216 = vpack.c.b16 %v172, %v168
    %v217 = vpack.c.b16 %v173, %v169
    %v218 = vpack.c.b16 %v174, %v170
    %v219 = vpack.c.b16 %v179, %v175
    %v220 = vpack.c.b16 %v180, %v176
    %v221 = vpack.c.b16 %v181, %v177
    %v222 = vpack.c.b16 %v182, %v178
    %v223 = vpack.c.b16 %v187, %v183
    %v224 = vpack.c.b16 %v188, %v184
    %v225 = vpack.c.b16 %v189, %v185
    %v226 = vpack.c.b16 %v190, %v186
    %v227 = vpack.c.b16 %v195, %v191
    %v228 = vpack.c.b16 %v196, %v192
    %v229 = vpack.c.b16 %v197, %v193
    %v230 = vpack.c.b16 %v198, %v194
    %263 = vmatpush.bf16.msra.mxu0 %v227
    %264 = vmatpush.bf16.msra.mxu0 %v223
    %265 = vmatpush.bf16.msra.mxu0 %v219
    %266 = vmatpush.bf16.msra.mxu0 %v215
    %267 = vmatpush.bf16.msra.mxu0 %v211
    %268 = vmatpush.bf16.msra.mxu0 %v207
    %269 = vmatpush.bf16.msra.mxu0 %v203
    %270 = vmatpush.bf16.msra.mxu0 %v199
    %271 = vmatmul.bf16.gmra.mxu0 %v60
    %v272 = vpop.f32.mrf.mxu0
    %v273 = vadd.f32 %v95, %v272
    %v274 = vpop.f32.mrf.mxu0
    %275 = vdwg.mxu0
    %276 = vmatpush.bf16.msra.mxu0 %v228
    %277 = vmatpush.bf16.msra.mxu0 %v224
    %278 = vmatpush.bf16.msra.mxu0 %v220
    %279 = vmatpush.bf16.msra.mxu0 %v216
    %280 = vmatpush.bf16.msra.mxu0 %v212
    %281 = vmatpush.bf16.msra.mxu0 %v208
    %282 = vmatpush.bf16.msra.mxu0 %v204
    %283 = vmatpush.bf16.msra.mxu0 %v200
    %284 = vmatmul.bf16.gmra.mxu0 %v60
    %v285 = vpop.f32.mrf.mxu0
    %v286 = vadd.f32 %v96, %v285
    %v287 = vpop.f32.mrf.mxu0
    %288 = vdwg.mxu0
    %289 = vmatpush.bf16.msra.mxu0 %v229
    %290 = vmatpush.bf16.msra.mxu0 %v225
    %291 = vmatpush.bf16.msra.mxu0 %v221
    %292 = vmatpush.bf16.msra.mxu0 %v217
    %293 = vmatpush.bf16.msra.mxu0 %v213
    %294 = vmatpush.bf16.msra.mxu0 %v209
    %295 = vmatpush.bf16.msra.mxu0 %v205
    %296 = vmatpush.bf16.msra.mxu0 %v201
    %297 = vmatmul.bf16.gmra.mxu0 %v60
    %v298 = vpop.f32.mrf.mxu0
    %v299 = vadd.f32 %v97, %v298
    %v300 = vpop.f32.mrf.mxu0
    %301 = vdwg.mxu0
    %302 = vmatpush.bf16.msra.mxu0 %v230
    %303 = vmatpush.bf16.msra.mxu0 %v226
    %304 = vmatpush.bf16.msra.mxu0 %v222
    %305 = vmatpush.bf16.msra.mxu0 %v218
    %306 = vmatpush.bf16.msra.mxu0 %v214
    %307 = vmatpush.bf16.msra.mxu0 %v210
    %308 = vmatpush.bf16.msra.mxu0 %v206
    %309 = vmatpush.bf16.msra.mxu0 %v202
    %310 = vmatmul.bf16.gmra.mxu0 %v60
    %v311 = vpop.f32.mrf.mxu0
    %v312 = vadd.f32 %v98, %v311
    %v313 = vpop.f32.mrf.mxu0
    %314 = vdwg.mxu0
    %v315 = vmax.f32 %v273, 0.0
    %v316 = vmax.f32 %v286, 0.0
    %v317 = vmax.f32 %v299, 0.0
    %v318 = vmax.f32 %v312, 0.0
    %v319 = vpack.c.bf16 %v315, %v315
    %v320 = vpack.c.bf16 %v316, %v316
    %v321 = vpack.c.bf16 %v317, %v317
    %v322 = vpack.c.bf16 %v318, %v318
    %v323 = vld [vmem:[#allocation5] sm:$0xff]
    %v324 = vld [vmem:[#allocation5 + $0x8] sm:$0xf]
    %v325 = vld [vmem:[#allocation5 + $0xc] sm:$0xff]
    %v326 = vld [vmem:[#allocation5 + $0x14] sm:$0xf]
    %v327 = vld [vmem:[#allocation5 + $0x18] sm:$0xff]
    %v328 = vld [vmem:[#allocation5 + $0x20] sm:$0xf]
    %v329 = vld [vmem:[#allocation5 + $0x24] sm:$0xff]
    %v330 = vld [vmem:[#allocation5 + $0x2c] sm:$0xf]
    %v331 = vld [vmem:[#allocation5 + $0x30] sm:$0xff]
    %v332 = vld [vmem:[#allocation5 + $0x38] sm:$0xf]
    %v333 = vld [vmem:[#allocation5 + $0x3c] sm:$0xff]
    %v334 = vld [vmem:[#allocation5 + $0x44] sm:$0xf]
    %v335 = vld [vmem:[#allocation5 + $0x48] sm:$0xff]
    %v336 = vld [vmem:[#allocation5 + $0x50] sm:$0xf]
    %v337 = vld [vmem:[#allocation5 + $0x54] sm:$0xff]
    %v338 = vld [vmem:[#allocation5 + $0x5c] sm:$0xf]
    %v339 = vld [vmem:[#allocation5 + $0x60] sm:$0xff]
    %v340 = vld [vmem:[#allocation5 + $0x68] sm:$0xf]
    %v341 = vld [vmem:[#allocation5 + $0x6c] sm:$0xff]
    %v342 = vld [vmem:[#allocation5 + $0x74] sm:$0xf]
    %v343 = vld [vmem:[#allocation5 + $0x78] sm:$0xff]
    %v344 = vld [vmem:[#allocation5 + $0x80] sm:$0xf]
    %v345 = vld [vmem:[#allocation5 + $0x84] sm:$0xff]
    %v346 = vld [vmem:[#allocation5 + $0x8c] sm:$0xf]
    %v347 = vld [vmem:[#allocation5 + $0x90] sm:$0xff]
    %v348 = vld [vmem:[#allocation5 + $0x98] sm:$0xf]
    %v349 = vld [vmem:[#allocation5 + $0x9c] sm:$0xff]
    %v350 = vld [vmem:[#allocation5 + $0xa4] sm:$0xf]
    %v351 = vld [vmem:[#allocation5 + $0xa8] sm:$0xff]
    %v352 = vld [vmem:[#allocation5 + $0xb0] sm:$0xf]
    %v353 = vld [vmem:[#allocation5 + $0xb4] sm:$0xff]
    %v354 = vld [vmem:[#allocation5 + $0xbc] sm:$0xf]
    %v355 = vld [vmem:[#allocation5 + $0xc0] sm:$0xff]
    %v356 = vld [vmem:[#allocation5 + $0xc8] sm:$0xf]
    %v357 = vld [vmem:[#allocation5 + $0xcc] sm:$0xff]
    %v358 = vld [vmem:[#allocation5 + $0xd4] sm:$0xf]
    %v359 = vld [vmem:[#allocation5 + $0xd8] sm:$0xff]
    %v360 = vld [vmem:[#allocation5 + $0xe0] sm:$0xf]
    %v361 = vld [vmem:[#allocation5 + $0xe4] sm:$0xff]
    %v362 = vld [vmem:[#allocation5 + $0xec] sm:$0xf]
    %v363 = vld [vmem:[#allocation5 + $0xf0] sm:$0xff]
    %v364 = vld [vmem:[#allocation5 + $0xf8] sm:$0xf]
    %v365 = vld [vmem:[#allocation5 + $0xfc] sm:$0xff]
    %v366 = vld [vmem:[#allocation5 + $0x104] sm:$0xf]
    %v367 = vld [vmem:[#allocation5 + $0x108] sm:$0xff]
    %v368 = vld [vmem:[#allocation5 + $0x110] sm:$0xf]
    %v369 = vld [vmem:[#allocation5 + $0x114] sm:$0xff]
    %v370 = vld [vmem:[#allocation5 + $0x11c] sm:$0xf]
    %v371 = vld [vmem:[#allocation5 + $0x120] sm:$0xff]
    %v372 = vld [vmem:[#allocation5 + $0x128] sm:$0xf]
    %v373 = vld [vmem:[#allocation5 + $0x12c] sm:$0xff]
    %v374 = vld [vmem:[#allocation5 + $0x134] sm:$0xf]
    %v375 = vld [vmem:[#allocation5 + $0x138] sm:$0xff]
    %v376 = vld [vmem:[#allocation5 + $0x140] sm:$0xf]
    %v377 = vld [vmem:[#allocation5 + $0x144] sm:$0xff]
    %v378 = vld [vmem:[#allocation5 + $0x14c] sm:$0xf]
    %v379 = vld [vmem:[#allocation5 + $0x150] sm:$0xff]
    %v380 = vld [vmem:[#allocation5 + $0x158] sm:$0xf]
    %v381 = vld [vmem:[#allocation5 + $0x15c] sm:$0xff]
    %v382 = vld [vmem:[#allocation5 + $0x164] sm:$0xf]
    %v383 = vld [vmem:[#allocation5 + $0x168] sm:$0xff]
    %v384 = vld [vmem:[#allocation5 + $0x170] sm:$0xf]
    %v385 = vld [vmem:[#allocation5 + $0x174] sm:$0xff]
    %v386 = vld [vmem:[#allocation5 + $0x17c] sm:$0xf]
    %v387 = vld [vmem:[#allocation5 + $0x180] sm:$0xff]
    %v388 = vld [vmem:[#allocation5 + $0x188] sm:$0xf]
    %v389 = vld [vmem:[#allocation5 + $0x18c] sm:$0xff]
    %v390 = vld [vmem:[#allocation5 + $0x194] sm:$0xf]
    %v391 = vld [vmem:[#allocation5 + $0x198] sm:$0xff]
    %v392 = vld [vmem:[#allocation5 + $0x1a0] sm:$0xf]
    %v393 = vld [vmem:[#allocation5 + $0x1a4] sm:$0xff]
    %v394 = vld [vmem:[#allocation5 + $0x1ac] sm:$0xf]
    %v395 = vld [vmem:[#allocation5 + $0x1b0] sm:$0xff]
    %v396 = vld [vmem:[#allocation5 + $0x1b8] sm:$0xf]
    %v397 = vld [vmem:[#allocation5 + $0x1bc] sm:$0xff]
    %v398 = vld [vmem:[#allocation5 + $0x1c4] sm:$0xf]
    %v399 = vld [vmem:[#allocation5 + $0x1c8] sm:$0xff]
    %v400 = vld [vmem:[#allocation5 + $0x1d0] sm:$0xf]
    %v401 = vld [vmem:[#allocation5 + $0x1d4] sm:$0xff]
    %v402 = vld [vmem:[#allocation5 + $0x1dc] sm:$0xf]
    %v403 = vld [vmem:[#allocation5 + $0x1e0] sm:$0xff]
    %v404 = vld [vmem:[#allocation5 + $0x1e8] sm:$0xf]
    %v405 = vld [vmem:[#allocation5 + $0x1ec] sm:$0xff]
    %v406 = vld [vmem:[#allocation5 + $0x1f4] sm:$0xf]
    %v407 = vld [vmem:[#allocation5 + $0x1f8] sm:$0xff]
    %v408 = vld [vmem:[#allocation5 + $0x200] sm:$0xf]
    %v409 = vld [vmem:[#allocation5 + $0x204] sm:$0xff]
    %v410 = vld [vmem:[#allocation5 + $0x20c] sm:$0xf]
    %v411 = vld [vmem:[#allocation5 + $0x210] sm:$0xff]
    %v412 = vld [vmem:[#allocation5 + $0x218] sm:$0xf]
    %v413 = vld [vmem:[#allocation5 + $0x21c] sm:$0xff]
    %v414 = vld [vmem:[#allocation5 + $0x224] sm:$0xf]
    %v415 = vld [vmem:[#allocation5 + $0x228] sm:$0xff]
    %v416 = vld [vmem:[#allocation5 + $0x230] sm:$0xf]
    %v417 = vld [vmem:[#allocation5 + $0x234] sm:$0xff]
    %v418 = vld [vmem:[#allocation5 + $0x23c] sm:$0xf]
    %v419 = vld [vmem:[#allocation5 + $0x240] sm:$0xff]
    %v420 = vld [vmem:[#allocation5 + $0x248] sm:$0xf]
    %v421 = vld [vmem:[#allocation5 + $0x24c] sm:$0xff]
    %v422 = vld [vmem:[#allocation5 + $0x254] sm:$0xf]
    %v423 = vld [vmem:[#allocation5 + $0x258] sm:$0xff]
    %v424 = vld [vmem:[#allocation5 + $0x260] sm:$0xf]
    %v425 = vld [vmem:[#allocation5 + $0x264] sm:$0xff]
    %v426 = vld [vmem:[#allocation5 + $0x26c] sm:$0xf]
    %v427 = vld [vmem:[#allocation5 + $0x270] sm:$0xff]
    %v428 = vld [vmem:[#allocation5 + $0x278] sm:$0xf]
    %v429 = vld [vmem:[#allocation5 + $0x27c] sm:$0xff]
    %v430 = vld [vmem:[#allocation5 + $0x284] sm:$0xf]
    %v431 = vld [vmem:[#allocation5 + $0x288] sm:$0xff]
    %v432 = vld [vmem:[#allocation5 + $0x290] sm:$0xf]
    %v433 = vld [vmem:[#allocation5 + $0x294] sm:$0xff]
    %v434 = vld [vmem:[#allocation5 + $0x29c] sm:$0xf]
    %v435 = vld [vmem:[#allocation5 + $0x2a0] sm:$0xff]
    %v436 = vld [vmem:[#allocation5 + $0x2a8] sm:$0xf]
    %v437 = vld [vmem:[#allocation5 + $0x2ac] sm:$0xff]
    %v438 = vld [vmem:[#allocation5 + $0x2b4] sm:$0xf]
    %v439 = vld [vmem:[#allocation5 + $0x2b8] sm:$0xff]
    %v440 = vld [vmem:[#allocation5 + $0x2c0] sm:$0xf]
    %v441 = vld [vmem:[#allocation5 + $0x2c4] sm:$0xff]
    %v442 = vld [vmem:[#allocation5 + $0x2cc] sm:$0xf]
    %v443 = vld [vmem:[#allocation5 + $0x2d0] sm:$0xff]
    %v444 = vld [vmem:[#allocation5 + $0x2d8] sm:$0xf]
    %v445 = vld [vmem:[#allocation5 + $0x2dc] sm:$0xff]
    %v446 = vld [vmem:[#allocation5 + $0x2e4] sm:$0xf]
    %v447 = vld [vmem:[#allocation5 + $0x2e8] sm:$0xff]
    %v448 = vld [vmem:[#allocation5 + $0x2f0] sm:$0xf]
    %v449 = vld [vmem:[#allocation5 + $0x2f4] sm:$0xff]
    %v450 = vld [vmem:[#allocation5 + $0x2fc] sm:$0xf]
    %v451 = vld [vmem:[%s4] sm:$0x7]
    %v453 = vperm.slane %v451, 0
    %v454 = vperm.slane %v451, 1
    %v455 = vperm.slane %v451, 2
    %v587 = vunpack.c.l.b16 %v323
    %v588 = vunpack.c.h.b16 %v323
    %v589 = vunpack.c.l.b16 %v324
    %v590 = vunpack.c.l.b16 %v325
    %v591 = vunpack.c.h.b16 %v325
    %v592 = vunpack.c.l.b16 %v326
    %v593 = vunpack.c.l.b16 %v327
    %v594 = vunpack.c.h.b16 %v327
    %v595 = vunpack.c.l.b16 %v328
    %v596 = vunpack.c.l.b16 %v329
    %v597 = vunpack.c.h.b16 %v329
    %v598 = vunpack.c.l.b16 %v330
    %v599 = vunpack.c.l.b16 %v331
    %v600 = vunpack.c.h.b16 %v331
    %v601 = vunpack.c.l.b16 %v332
    %v602 = vunpack.c.l.b16 %v333
    %v603 = vunpack.c.h.b16 %v333
    %v604 = vunpack.c.l.b16 %v334
    %v605 = vunpack.c.l.b16 %v335
    %v606 = vunpack.c.h.b16 %v335
    %v607 = vunpack.c.l.b16 %v336
    %v608 = vunpack.c.l.b16 %v337
    %v609 = vunpack.c.h.b16 %v337
    %v610 = vunpack.c.l.b16 %v338
    %v611 = vunpack.c.l.b16 %v339
    %v612 = vunpack.c.h.b16 %v339
    %v613 = vunpack.c.l.b16 %v340
    %v614 = vunpack.c.l.b16 %v341
    %v615 = vunpack.c.h.b16 %v341
    %v616 = vunpack.c.l.b16 %v342
    %v617 = vunpack.c.l.b16 %v343
    %v618 = vunpack.c.h.b16 %v343
    %v619 = vunpack.c.l.b16 %v344
    %v620 = vunpack.c.l.b16 %v345
    %v621 = vunpack.c.h.b16 %v345
    %v622 = vunpack.c.l.b16 %v346
    %v623 = vunpack.c.l.b16 %v347
    %v624 = vunpack.c.h.b16 %v347
    %v625 = vunpack.c.l.b16 %v348
    %v626 = vunpack.c.l.b16 %v349
    %v627 = vunpack.c.h.b16 %v349
    %v628 = vunpack.c.l.b16 %v350
    %v629 = vunpack.c.l.b16 %v351
    %v630 = vunpack.c.h.b16 %v351
    %v631 = vunpack.c.l.b16 %v352
    %v632 = vunpack.c.l.b16 %v353
    %v633 = vunpack.c.h.b16 %v353
    %v634 = vunpack.c.l.b16 %v354
    %v635 = vunpack.c.l.b16 %v355
    %v636 = vunpack.c.h.b16 %v355
    %v637 = vunpack.c.l.b16 %v356
    %v638 = vunpack.c.l.b16 %v357
    %v639 = vunpack.c.h.b16 %v357
    %v640 = vunpack.c.l.b16 %v358
    %v641 = vunpack.c.l.b16 %v359
    %v642 = vunpack.c.h.b16 %v359
    %v643 = vunpack.c.l.b16 %v360
    %v644 = vunpack.c.l.b16 %v361
    %v645 = vunpack.c.h.b16 %v361
    %v646 = vunpack.c.l.b16 %v362
    %v647 = vunpack.c.l.b16 %v363
    %v648 = vunpack.c.h.b16 %v363
    %v649 = vunpack.c.l.b16 %v364
    %v650 = vunpack.c.l.b16 %v365
    %v651 = vunpack.c.h.b16 %v365
    %v652 = vunpack.c.l.b16 %v366
    %v653 = vunpack.c.l.b16 %v367
    %v654 = vunpack.c.h.b16 %v367
    %v655 = vunpack.c.l.b16 %v368
    %v656 = vunpack.c.l.b16 %v369
    %v657 = vunpack.c.h.b16 %v369
    %v658 = vunpack.c.l.b16 %v370
    %v659 = vunpack.c.l.b16 %v371
    %v660 = vunpack.c.h.b16 %v371
    %v661 = vunpack.c.l.b16 %v372
    %v662 = vunpack.c.l.b16 %v373
    %v663 = vunpack.c.h.b16 %v373
    %v664 = vunpack.c.l.b16 %v374
    %v665 = vunpack.c.l.b16 %v375
    %v666 = vunpack.c.h.b16 %v375
    %v667 = vunpack.c.l.b16 %v376
    %v668 = vunpack.c.l.b16 %v377
    %v669 = vunpack.c.h.b16 %v377
    %v670 = vunpack.c.l.b16 %v378
    %v671 = vunpack.c.l.b16 %v379
    %v672 = vunpack.c.h.b16 %v379
    %v673 = vunpack.c.l.b16 %v380
    %v674 = vunpack.c.l.b16 %v381
    %v675 = vunpack.c.h.b16 %v381
    %v676 = vunpack.c.l.b16 %v382
    %v677 = vunpack.c.l.b16 %v383
    %v678 = vunpack.c.h.b16 %v383
    %v679 = vunpack.c.l.b16 %v384
    %v680 = vunpack.c.l.b16 %v385
    %v681 = vunpack.c.h.b16 %v385
    %v682 = vunpack.c.l.b16 %v386
    %v683 = vunpack.c.l.b16 %v387
    %v684 = vunpack.c.h.b16 %v387
    %v685 = vunpack.c.l.b16 %v388
    %v686 = vunpack.c.l.b16 %v389
    %v687 = vunpack.c.h.b16 %v389
    %v688 = vunpack.c.l.b16 %v390
    %v689 = vunpack.c.l.b16 %v391
    %v690 = vunpack.c.h.b16 %v391
    %v691 = vunpack.c.l.b16 %v392
    %v692 = vunpack.c.l.b16 %v393
    %v693 = vunpack.c.h.b16 %v393
    %v694 = vunpack.c.l.b16 %v394
    %v695 = vunpack.c.l.b16 %v395
    %v696 = vunpack.c.h.b16 %v395
    %v697 = vunpack.c.l.b16 %v396
    %v698 = vunpack.c.l.b16 %v397
    %v699 = vunpack.c.h.b16 %v397
    %v700 = vunpack.c.l.b16 %v398
    %v701 = vunpack.c.l.b16 %v399
    %v702 = vunpack.c.h.b16 %v399
    %v703 = vunpack.c.l.b16 %v400
    %v704 = vunpack.c.l.b16 %v401
    %v705 = vunpack.c.h.b16 %v401
    %v706 = vunpack.c.l.b16 %v402
    %v707 = vunpack.c.l.b16 %v403
    %v708 = vunpack.c.h.b16 %v403
    %v709 = vunpack.c.l.b16 %v404
    %v710 = vunpack.c.l.b16 %v405
    %v711 = vunpack.c.h.b16 %v405
    %v712 = vunpack.c.l.b16 %v406
    %v713 = vunpack.c.l.b16 %v407
    %v714 = vunpack.c.h.b16 %v407
    %v715 = vunpack.c.l.b16 %v408
    %v716 = vunpack.c.l.b16 %v409
    %v717 = vunpack.c.h.b16 %v409
    %v718 = vunpack.c.l.b16 %v410
    %v719 = vunpack.c.l.b16 %v411
    %v720 = vunpack.c.h.b16 %v411
    %v721 = vunpack.c.l.b16 %v412
    %v722 = vunpack.c.l.b16 %v413
    %v723 = vunpack.c.h.b16 %v413
    %v724 = vunpack.c.l.b16 %v414
    %v725 = vunpack.c.l.b16 %v415
    %v726 = vunpack.c.h.b16 %v415
    %v727 = vunpack.c.l.b16 %v416
    %v728 = vunpack.c.l.b16 %v417
    %v729 = vunpack.c.h.b16 %v417
    %v730 = vunpack.c.l.b16 %v418
    %v731 = vunpack.c.l.b16 %v419
    %v732 = vunpack.c.h.b16 %v419
    %v733 = vunpack.c.l.b16 %v420
    %v734 = vunpack.c.l.b16 %v421
    %v735 = vunpack.c.h.b16 %v421
    %v736 = vunpack.c.l.b16 %v422
    %v737 = vunpack.c.l.b16 %v423
    %v738 = vunpack.c.h.b16 %v423
    %v739 = vunpack.c.l.b16 %v424
    %v740 = vunpack.c.l.b16 %v425
    %v741 = vunpack.c.h.b16 %v425
    %v742 = vunpack.c.l.b16 %v426
    %v743 = vunpack.c.l.b16 %v427
    %v744 = vunpack.c.h.b16 %v427
    %v745 = vunpack.c.l.b16 %v428
    %v746 = vunpack.c.l.b16 %v429
    %v747 = vunpack.c.h.b16 %v429
    %v748 = vunpack.c.l.b16 %v430
    %v749 = vunpack.c.l.b16 %v431
    %v750 = vunpack.c.h.b16 %v431
    %v751 = vunpack.c.l.b16 %v432
    %v752 = vunpack.c.l.b16 %v433
    %v753 = vunpack.c.h.b16 %v433
    %v754 = vunpack.c.l.b16 %v434
    %v755 = vunpack.c.l.b16 %v435
    %v756 = vunpack.c.h.b16 %v435
    %v757 = vunpack.c.l.b16 %v436
    %v758 = vunpack.c.l.b16 %v437
    %v759 = vunpack.c.h.b16 %v437
    %v760 = vunpack.c.l.b16 %v438
    %v761 = vunpack.c.l.b16 %v439
    %v762 = vunpack.c.h.b16 %v439
    %v763 = vunpack.c.l.b16 %v440
    %v764 = vunpack.c.l.b16 %v441
    %v765 = vunpack.c.h.b16 %v441
    %v766 = vunpack.c.l.b16 %v442
    %v767 = vunpack.c.l.b16 %v443
    %v768 = vunpack.c.h.b16 %v443
    %v769 = vunpack.c.l.b16 %v444
    %v770 = vunpack.c.l.b16 %v445
    %v771 = vunpack.c.h.b16 %v445
    %v772 = vunpack.c.l.b16 %v446
    %v773 = vunpack.c.l.b16 %v447
    %v774 = vunpack.c.h.b16 %v447
    %v775 = vunpack.c.l.b16 %v448
    %v776 = vunpack.c.l.b16 %v449
    %v777 = vunpack.c.h.b16 %v449
    %v778 = vunpack.c.l.b16 %v450
    %v779 = vpack.c.b16 %v590, %v587
    %v780 = vpack.c.b16 %v591, %v588
    %v781 = vpack.c.b16 %v592, %v589
    %v782 = vpack.c.b16 %v596, %v593
    %v783 = vpack.c.b16 %v597, %v594
    %v784 = vpack.c.b16 %v598, %v595
    %v785 = vpack.c.b16 %v602, %v599
    %v786 = vpack.c.b16 %v603, %v600
    %v787 = vpack.c.b16 %v604, %v601
    %v788 = vpack.c.b16 %v608, %v605
    %v789 = vpack.c.b16 %v609, %v606
    %v790 = vpack.c.b16 %v610, %v607
    %v791 = vpack.c.b16 %v614, %v611
    %v792 = vpack.c.b16 %v615, %v612
    %v793 = vpack.c.b16 %v616, %v613
    %v794 = vpack.c.b16 %v620, %v617
    %v795 = vpack.c.b16 %v621, %v618
    %v796 = vpack.c.b16 %v622, %v619
    %v797 = vpack.c.b16 %v626, %v623
    %v798 = vpack.c.b16 %v627, %v624
    %v799 = vpack.c.b16 %v628, %v625
    %v800 = vpack.c.b16 %v632, %v629
    %v801 = vpack.c.b16 %v633, %v630
    %v802 = vpack.c.b16 %v634, %v631
    %v803 = vpack.c.b16 %v638, %v635
    %v804 = vpack.c.b16 %v639, %v636
    %v805 = vpack.c.b16 %v640, %v637
    %v806 = vpack.c.b16 %v644, %v641
    %v807 = vpack.c.b16 %v645, %v642
    %v808 = vpack.c.b16 %v646, %v643
    %v809 = vpack.c.b16 %v650, %v647
    %v810 = vpack.c.b16 %v651, %v648
    %v811 = vpack.c.b16 %v652, %v649
    %v812 = vpack.c.b16 %v656, %v653
    %v813 = vpack.c.b16 %v657, %v654
    %v814 = vpack.c.b16 %v658, %v655
    %v815 = vpack.c.b16 %v662, %v659
    %v816 = vpack.c.b16 %v663, %v660
    %v817 = vpack.c.b16 %v664, %v661
    %v818 = vpack.c.b16 %v668, %v665
    %v819 = vpack.c.b16 %v669, %v666
    %v820 = vpack.c.b16 %v670, %v667
    %v821 = vpack.c.b16 %v674, %v671
    %v822 = vpack.c.b16 %v675, %v672
    %v823 = vpack.c.b16 %v676, %v673
    %v824 = vpack.c.b16 %v680, %v677
    %v825 = vpack.c.b16 %v681, %v678
    %v826 = vpack.c.b16 %v682, %v679
    %v827 = vpack.c.b16 %v686, %v683
    %v828 = vpack.c.b16 %v687, %v684
    %v829 = vpack.c.b16 %v688, %v685
    %v830 = vpack.c.b16 %v692, %v689
    %v831 = vpack.c.b16 %v693, %v690
    %v832 = vpack.c.b16 %v694, %v691
    %v833 = vpack.c.b16 %v698, %v695
    %v834 = vpack.c.b16 %v699, %v696
    %v835 = vpack.c.b16 %v700, %v697
    %v836 = vpack.c.b16 %v704, %v701
    %v837 = vpack.c.b16 %v705, %v702
    %v838 = vpack.c.b16 %v706, %v703
    %v839 = vpack.c.b16 %v710, %v707
    %v840 = vpack.c.b16 %v711, %v708
    %v841 = vpack.c.b16 %v712, %v709
    %v842 = vpack.c.b16 %v716, %v713
    %v843 = vpack.c.b16 %v717, %v714
    %v844 = vpack.c.b16 %v718, %v715
    %v845 = vpack.c.b16 %v722, %v719
    %v846 = vpack.c.b16 %v723, %v720
    %v847 = vpack.c.b16 %v724, %v721
    %v848 = vpack.c.b16 %v728, %v725
    %v849 = vpack.c.b16 %v729, %v726
    %v850 = vpack.c.b16 %v730, %v727
    %v851 = vpack.c.b16 %v734, %v731
    %v852 = vpack.c.b16 %v735, %v732
    %v853 = vpack.c.b16 %v736, %v733
    %v854 = vpack.c.b16 %v740, %v737
    %v855 = vpack.c.b16 %v741, %v738
    %v856 = vpack.c.b16 %v742, %v739
    %v857 = vpack.c.b16 %v746, %v743
    %v858 = vpack.c.b16 %v747, %v744
    %v859 = vpack.c.b16 %v748, %v745
    %v860 = vpack.c.b16 %v752, %v749
    %v861 = vpack.c.b16 %v753, %v750
    %v862 = vpack.c.b16 %v754, %v751
    %v863 = vpack.c.b16 %v758, %v755
    %v864 = vpack.c.b16 %v759, %v756
    %v865 = vpack.c.b16 %v760, %v757
    %v866 = vpack.c.b16 %v764, %v761
    %v867 = vpack.c.b16 %v765, %v762
    %v868 = vpack.c.b16 %v766, %v763
    %v869 = vpack.c.b16 %v770, %v767
    %v870 = vpack.c.b16 %v771, %v768
    %v871 = vpack.c.b16 %v772, %v769
    %v872 = vpack.c.b16 %v776, %v773
    %v873 = vpack.c.b16 %v777, %v774
    %v874 = vpack.c.b16 %v778, %v775
    %971 = vmatpush.bf16.msra.mxu0 %v800
    %972 = vmatpush.bf16.msra.mxu0 %v797
    %973 = vmatpush.bf16.msra.mxu0 %v794
    %974 = vmatpush.bf16.msra.mxu0 %v791
    %975 = vmatpush.bf16.msra.mxu0 %v788
    %976 = vmatpush.bf16.msra.mxu0 %v785
    %977 = vmatpush.bf16.msra.mxu0 %v782
    %978 = vmatpush.bf16.msra.mxu0 %v779
    %979 = vmatmul.bf16.gmra.mxu0 %v319
    %v980 = vpop.f32.mrf.mxu0
    %v981 = vadd.f32 %v453, %v980
    %v982 = vpop.f32.mrf.mxu0
    %983 = vdwg.mxu0
    %984 = vmatpush.bf16.msra.mxu0 %v824
    %985 = vmatpush.bf16.msra.mxu0 %v821
    %986 = vmatpush.bf16.msra.mxu0 %v818
    %987 = vmatpush.bf16.msra.mxu0 %v815
    %988 = vmatpush.bf16.msra.mxu0 %v812
    %989 = vmatpush.bf16.msra.mxu0 %v809
    %990 = vmatpush.bf16.msra.mxu0 %v806
    %991 = vmatpush.bf16.msra.mxu0 %v803
    %992 = vmatmul.bf16.gmra.mxu0 %v320
    %v993 = vpop.f32.mrf.mxu0
    %v994 = vadd.f32 %v981, %v993
    %v995 = vpop.f32.mrf.mxu0
    %996 = vdwg.mxu0
    %997 = vmatpush.bf16.msra.mxu0 %v848
    %998 = vmatpush.bf16.msra.mxu0 %v845
    %999 = vmatpush.bf16.msra.mxu0 %v842
    %1000 = vmatpush.bf16.msra.mxu0 %v839
    %1001 = vmatpush.bf16.msra.mxu0 %v836
    %1002 = vmatpush.bf16.msra.mxu0 %v833
    %1003 = vmatpush.bf16.msra.mxu0 %v830
    %1004 = vmatpush.bf16.msra.mxu0 %v827
    %1005 = vmatmul.bf16.gmra.mxu0 %v321
    %v1006 = vpop.f32.mrf.mxu0
    %v1007 = vadd.f32 %v994, %v1006
    %v1008 = vpop.f32.mrf.mxu0
    %1009 = vdwg.mxu0
    %1010 = vmatpush.bf16.msra.mxu0 %v872
    %1011 = vmatpush.bf16.msra.mxu0 %v869
    %1012 = vmatpush.bf16.msra.mxu0 %v866
    %1013 = vmatpush.bf16.msra.mxu0 %v863
    %1014 = vmatpush.bf16.msra.mxu0 %v860
    %1015 = vmatpush.bf16.msra.mxu0 %v857
    %1016 = vmatpush.bf16.msra.mxu0 %v854
    %1017 = vmatpush.bf16.msra.mxu0 %v851
    %1018 = vmatmul.bf16.gmra.mxu0 %v322
    %v1019 = vpop.f32.mrf.mxu0
    %v1020 = vadd.f32 %v1007, %v1019
    %v1021 = vpop.f32.mrf.mxu0
    %1022 = vdwg.mxu0
    %1023 = vmatpush.bf16.msra.mxu0 %v801
    %1024 = vmatpush.bf16.msra.mxu0 %v798
    %1025 = vmatpush.bf16.msra.mxu0 %v795
    %1026 = vmatpush.bf16.msra.mxu0 %v792
    %1027 = vmatpush.bf16.msra.mxu0 %v789
    %1028 = vmatpush.bf16.msra.mxu0 %v786
    %1029 = vmatpush.bf16.msra.mxu0 %v783
    %1030 = vmatpush.bf16.msra.mxu0 %v780
    %1031 = vmatmul.bf16.gmra.mxu0 %v319
    %v1032 = vpop.f32.mrf.mxu0
    %v1033 = vadd.f32 %v454, %v1032
    %v1034 = vpop.f32.mrf.mxu0
    %1035 = vdwg.mxu0
    %1036 = vmatpush.bf16.msra.mxu0 %v825
    %1037 = vmatpush.bf16.msra.mxu0 %v822
    %1038 = vmatpush.bf16.msra.mxu0 %v819
    %1039 = vmatpush.bf16.msra.mxu0 %v816
    %1040 = vmatpush.bf16.msra.mxu0 %v813
    %1041 = vmatpush.bf16.msra.mxu0 %v810
    %1042 = vmatpush.bf16.msra.mxu0 %v807
    %1043 = vmatpush.bf16.msra.mxu0 %v804
    %1044 = vmatmul.bf16.gmra.mxu0 %v320
    %v1045 = vpop.f32.mrf.mxu0
    %v1046 = vadd.f32 %v1033, %v1045
    %v1047 = vpop.f32.mrf.mxu0
    %1048 = vdwg.mxu0
    %1049 = vmatpush.bf16.msra.mxu0 %v849
    %1050 = vmatpush.bf16.msra.mxu0 %v846
    %1051 = vmatpush.bf16.msra.mxu0 %v843
    %1052 = vmatpush.bf16.msra.mxu0 %v840
    %1053 = vmatpush.bf16.msra.mxu0 %v837
    %1054 = vmatpush.bf16.msra.mxu0 %v834
    %1055 = vmatpush.bf16.msra.mxu0 %v831
    %1056 = vmatpush.bf16.msra.mxu0 %v828
    %1057 = vmatmul.bf16.gmra.mxu0 %v321
    %v1058 = vpop.f32.mrf.mxu0
    %v1059 = vadd.f32 %v1046, %v1058
    %v1060 = vpop.f32.mrf.mxu0
    %1061 = vdwg.mxu0
    %1062 = vmatpush.bf16.msra.mxu0 %v873
    %1063 = vmatpush.bf16.msra.mxu0 %v870
    %1064 = vmatpush.bf16.msra.mxu0 %v867
    %1065 = vmatpush.bf16.msra.mxu0 %v864
    %1066 = vmatpush.bf16.msra.mxu0 %v861
    %1067 = vmatpush.bf16.msra.mxu0 %v858
    %1068 = vmatpush.bf16.msra.mxu0 %v855
    %1069 = vmatpush.bf16.msra.mxu0 %v852
    %1070 = vmatmul.bf16.gmra.mxu0 %v322
    %v1071 = vpop.f32.mrf.mxu0
    %v1072 = vadd.f32 %v1059, %v1071
    %v1073 = vpop.f32.mrf.mxu0
    %1074 = vdwg.mxu0
    %1075 = vmatpush.bf16.msra.mxu0 %v802
    %1076 = vmatpush.bf16.msra.mxu0 %v799
    %1077 = vmatpush.bf16.msra.mxu0 %v796
    %1078 = vmatpush.bf16.msra.mxu0 %v793
    %1079 = vmatpush.bf16.msra.mxu0 %v790
    %1080 = vmatpush.bf16.msra.mxu0 %v787
    %1081 = vmatpush.bf16.msra.mxu0 %v784
    %1082 = vmatpush.bf16.msra.mxu0 %v781
    %1083 = vmatmul.bf16.gmra.mxu0 %v319
    %v1084 = vpop.f32.mrf.mxu0
    %v1085 = vadd.f32 %v455, %v1084
    %v1086 = vpop.f32.mrf.mxu0
    %1087 = vdwg.mxu0
    %1088 = vmatpush.bf16.msra.mxu0 %v826
    %1089 = vmatpush.bf16.msra.mxu0 %v823
    %1090 = vmatpush.bf16.msra.mxu0 %v820
    %1091 = vmatpush.bf16.msra.mxu0 %v817
    %1092 = vmatpush.bf16.msra.mxu0 %v814
    %1093 = vmatpush.bf16.msra.mxu0 %v811
    %1094 = vmatpush.bf16.msra.mxu0 %v808
    %1095 = vmatpush.bf16.msra.mxu0 %v805
    %1096 = vmatmul.bf16.gmra.mxu0 %v320
    %v1097 = vpop.f32.mrf.mxu0
    %v1098 = vadd.f32 %v1085, %v1097
    %v1099 = vpop.f32.mrf.mxu0
    %1100 = vdwg.mxu0
    %1101 = vmatpush.bf16.msra.mxu0 %v850
    %1102 = vmatpush.bf16.msra.mxu0 %v847
    %1103 = vmatpush.bf16.msra.mxu0 %v844
    %1104 = vmatpush.bf16.msra.mxu0 %v841
    %1105 = vmatpush.bf16.msra.mxu0 %v838
    %1106 = vmatpush.bf16.msra.mxu0 %v835
    %1107 = vmatpush.bf16.msra.mxu0 %v832
    %1108 = vmatpush.bf16.msra.mxu0 %v829
    %1109 = vmatmul.bf16.gmra.mxu0 %v321
    %v1110 = vpop.f32.mrf.mxu0
    %v1111 = vadd.f32 %v1098, %v1110
    %v1112 = vpop.f32.mrf.mxu0
    %1113 = vdwg.mxu0
    %1114 = vmatpush.bf16.msra.mxu0 %v874
    %1115 = vmatpush.bf16.msra.mxu0 %v871
    %1116 = vmatpush.bf16.msra.mxu0 %v868
    %1117 = vmatpush.bf16.msra.mxu0 %v865
    %1118 = vmatpush.bf16.msra.mxu0 %v862
    %1119 = vmatpush.bf16.msra.mxu0 %v859
    %1120 = vmatpush.bf16.msra.mxu0 %v856
    %1121 = vmatpush.bf16.msra.mxu0 %v853
    %1122 = vmatmul.bf16.gmra.mxu0 %v322
    %v1123 = vpop.f32.mrf.mxu0
    %v1124 = vadd.f32 %v1111, %v1123
    %v1125 = vpop.f32.mrf.mxu0
    %1126 = vdwg.mxu0
    %v1127 = vmax.f32 %v1020, 0.0
    %v1128 = vmax.f32 %v1072, 0.0
    %v1129 = vmax.f32 %v1124, 0.0
    %v1130 = vld [vmem:[%s5] sm:$0x7]
    %v1132 = vperm.slane %v1130, 0
    %v1133 = vperm.slane %v1130, 1
    %v1134 = vperm.slane %v1130, 2
    %v1138 = vmul.f32 %v1127, %v1132
    %v1139 = vmul.f32 %v1128, %v1133
    %v1140 = vmul.f32 %v1129, %v1134
    %v1141 = vadd.f32 %v1138, %v1139
    %v1142 = vadd.f32 %v1141, %v1140
    %1143 = vadd.xlane.f32.xlu0 %v1142
    %v1144 = vpop.xlane.xlu0 %1143
    %v1145 = vld [vmem:[#allocation2] sm:$0x1]
    %s1146 = vtos %v1145
    %v1147 = vstv %s1146
    %v1148 = vadd.f32 %v1144, %v1147
    %v1150 = vlaneseq
    %v1151 = vand.u32 %v1150, 127
    %v1152 = vperm.slane %v1148, %v1151
    %vm1153 = vcmask 1042434
    %v1154 = vsel %vm1153, %v1152, %v1152
    %vm1155 = vcmask 1043459
    %v1156 = vsel %vm1155, %v1152, %v1154
    %vm1157 = vcmask 1044484
    %v1158 = vsel %vm1157, %v1152, %v1156
    %vm1159 = vcmask 1045509
    %v1160 = vsel %vm1159, %v1152, %v1158
    %vm1161 = vcmask 1046534
    %v1162 = vsel %vm1161, %v1152, %v1160
    %vm1163 = vcmask 1047559
    %v1164 = vsel %vm1163, %v1152, %v1162
    %vm1166 = vcmask 64512
    %1167 = vst.msk [vmem:[%s7] sm:$0xff] %vm1166, %v1164
    // Predicated region
    $region38: #{critic_forward.1} parent=1 // pred_check
      _
    $region39: #{critic_forward.1} parent=1 // pred_check_branch
      %1169 = sbr.rel (0) target = $region41
    $region40: #{critic_forward.1} parent=1 // pred_region
      _
    $region41: #{critic_forward.1} parent=1 // pred_fallthru
      _
    // Predicated region
    $region42: #{critic_forward.1} parent=1 // pred_check
      _
    $region43: #{critic_forward.1} parent=1 // pred_check_branch
      %1171 = sbr.rel (0) target = $region45
    $region44: #{critic_forward.1} parent=1 // pred_region
      _
    $region45: #{critic_forward.1} parent=1 // pred_fallthru
      _
    %1172 = vsyncpa [#allocation4], 1
    %1173 = vsyncpa [#allocation6], 1

</llo_original>
